<compile_context>
chip_gen: v6e
topology: v6e:2x2x1
jax: 0.10.0
libtpu: 0.0.40
codegen_flags: <defaults>
</compile_context>

<pallas_src>
import functools

import jax
import jax.numpy as jnp
import numpy as np
from jax.experimental import pallas as pl
from jax.experimental.pallas import tpu as pltpu


# ------------------------------ helpers ------------------------------------ #

def _round_up(v, m):
    return ((v + m - 1) // m) * m


def _cdiv(a, b):
    return (a + b - 1) // b


def _pick_block_rows(n_rows_padded, target):
    """Rows per tile: multiple of 8, capped at `target`, and small enough that
    the row grid has >= 2 tiles (keeps both v7x TensorCores busy)."""
    if n_rows_padded <= 8:
        return 8
    br = min(target, _round_up(_cdiv(n_rows_padded, 2), 8))
    return max(8, br)


# ----------------------------- Pallas kernel ------------------------------- #

def _fused_mlp_kernel(*refs, num_layers, relu_flags, n_classes, compute_dtype):
    """One row-tile of nodes pushed through the whole layer stack in VMEM.

    refs = (x_ref, w0, b0, w1, b1, ..., w_{L-1}, b_{L-1}, o_ref)
      x_ref : (block_rows, din_p)  bf16 tile
      w_i   : (K_p, N_p)           bf16, whole array resident in VMEM
      b_i   : (1, N_p)             f32,  whole array resident in VMEM
      o_ref : (block_rows, n_classes) f32
    """
    x_ref, o_ref = refs[0], refs[-1]
    wb_refs = refs[1:-1]

    h = x_ref[...]                                   # bf16 activations
    y = None
    for li in range(num_layers):
        w = wb_refs[2 * li][...]
        b = wb_refs[2 * li + 1][...]
        # MXU matmul, f32 accumulation; bias + ReLU epilogue in f32 on the VPU.
        y = jnp.dot(h, w, preferred_element_type=jnp.float32) + b
        if relu_flags[li]:
            y = jnp.maximum(y, 0.0)
        if li + 1 < num_layers:
            h = y.astype(compute_dtype)              # back to bf16 between layers
    # Narrow (masked) store: only the true class columns reach HBM.
    o_ref[...] = y[:, :n_classes].astype(o_ref.dtype)


# ------------------------- Fused stack wrapper ------------------------------ #

def fused_mlp_stack(x, padded_layers, relu_flags, n_classes, *,
                    target_block_rows=1024, compute_dtype=jnp.bfloat16):
    """Apply a chain of pre-padded (W, b) Linear layers (optional ReLU each) to
    x in one pallas_call.  padded_layers[i] = (W_p (K_p, N_p) bf16, b_p (1, N_p) f32).
    Returns (n, n_classes) f32 logits."""
    n, d_in = x.shape
    num_layers = len(padded_layers)
    relu_flags = tuple(bool(r) for r in relu_flags)

    din_p = padded_layers[0][0].shape[0]
    dims = [din_p]
    for (w, b) in padded_layers:
        assert w.shape[0] == dims[-1], "consecutive layer dims must chain"
        dims.append(w.shape[1])

    # --- input prep: bf16 cast, rows -> multiple of 8, lanes -> din_p only --- #
    n_p = _round_up(max(n, 8), 8)
    if n_p == n and din_p == d_in:
        x_p = x.astype(compute_dtype)
    else:
        x_p = jnp.zeros((n_p, din_p), compute_dtype).at[:n, :d_in].set(
            x.astype(compute_dtype))

    block_rows = _pick_block_rows(n_p, target_block_rows)
    grid = (_cdiv(n_p, block_rows),)

    # --- specs --------------------------------------------------------------- #
    in_specs = [pl.BlockSpec((block_rows, din_p), lambda i: (i, 0))]
    flat_inputs = [x_p]
    for wp, bp in padded_layers:
        # Whole-array, single-buffered VMEM residency for weights and biases.
        in_specs.append(pl.BlockSpec(memory_space=pltpu.MemorySpace.VMEM))
        in_specs.append(pl.BlockSpec(memory_space=pltpu.MemorySpace.VMEM))
        flat_inputs.append(wp)
        flat_inputs.append(bp)
    out_spec = pl.BlockSpec((block_rows, n_classes), lambda i: (i, 0))
    out_shape = jax.ShapeDtypeStruct((n_p, n_classes), jnp.float32)

    # --- VMEM budget --------------------------------------------------------- #
    itemsz = jnp.dtype(compute_dtype).itemsize
    weight_bytes = sum(w.size * itemsz + b.size * 4 for w, b in padded_layers)
    max_dim = max(dims)
    act_bytes = 4 * block_rows * max_dim * 4            # live activations (f32 + bf16)
    io_bytes = (2 * block_rows * din_p * itemsz         # double-buffered input tile
                + 2 * block_rows * n_classes * 4)       # double-buffered output tile
    need = weight_bytes + act_bytes + io_bytes
    try:
        vmem_cap = int(pltpu.get_tpu_info().vmem_capacity_bytes)
    except Exception:
        vmem_cap = 64 << 20                             # conservative (v7x per-TC)
    vmem_limit = int(min(int(0.7 * vmem_cap), max(32 << 20, 2 * need)))

    out = pl.pallas_call(
        functools.partial(_fused_mlp_kernel,
                          num_layers=num_layers,
                          relu_flags=relu_flags,
                          n_classes=n_classes,
                          compute_dtype=compute_dtype),
        out_shape=out_shape,
        grid_spec=pltpu.PrefetchScalarGridSpec(
            num_scalar_prefetch=0,
            grid=grid,
            in_specs=in_specs,
            out_specs=out_spec,
        ),
        compiler_params=pltpu.CompilerParams(
            dimension_semantics=("parallel",),          # row tiles shard across TCs
            vmem_limit_bytes=vmem_limit),
    )(*flat_inputs)

    return out[:n]


# --------------------------- Parameter creation ----------------------------- #

def _init_linear(key, d_in, d_out, dtype=jnp.float32):
    """PyTorch-style uniform(-1/sqrt(fan_in), 1/sqrt(fan_in)) init."""
    kw, kb = jax.random.split(key)
    bound = 1.0 / jnp.sqrt(jnp.asarray(d_in, dtype))
    w = jax.random.uniform(kw, (d_in, d_out), dtype, -bound, bound)
    b = jax.random.uniform(kb, (d_out,), dtype, -bound, bound)
    return w, b


def make_params(num_features, edge_dim, n_hidden, num_gnn_layers,
                n_classes=2, seed=0):
    key = jax.random.PRNGKey(seed)
    keys = jax.random.split(key, 2 + num_gnn_layers + 3)
    params = {}
    params["node_emb"] = _init_linear(keys[0], num_features, n_hidden)
    params["edge_emb"] = _init_linear(keys[1], edge_dim, n_hidden)  # unused (node readout)
    params["mlp"] = [
        _init_linear(keys[2 + l], n_hidden, n_hidden)
        for l in range(num_gnn_layers)
    ]
    params["mlp_out"] = [
        _init_linear(keys[2 + num_gnn_layers + 0], n_hidden, 50),
        _init_linear(keys[2 + num_gnn_layers + 1], 50, 25),
        _init_linear(keys[2 + num_gnn_layers + 2], 25, n_classes),
    ]
    return params


def pad_params_for_kernel(params, compute_dtype=jnp.bfloat16):
    """One-time weight prep (hoisted out of the forward): pad feature dims
    (first K to a multiple of 8, everything else to multiples of 128), cast
    weights to bf16, biases to f32.  Padded columns/rows are zero so padded
    lanes stay exactly zero through bias-add and ReLU."""
    layers = [params["node_emb"]] + list(params["mlp"]) + list(params["mlp_out"])
    d_in = layers[0][0].shape[0]
    padded = []
    prev_p = _round_up(d_in, 8)
    for (w, b) in layers:
        di, do = w.shape
        assert di <= prev_p
        do_p = _round_up(do, 128)
        wp = jnp.zeros((prev_p, do_p), compute_dtype).at[:di, :do].set(
            w.astype(compute_dtype))
        bp = jnp.zeros((1, do_p), jnp.float32).at[0, :do].set(
            b.astype(jnp.float32))
        padded.append((wp, bp))
        prev_p = do_p
    return padded


# ------------------------------ Forward pass -------------------------------- #

def new_mlpe_forward(padded_layers, x, edge_index, edge_attr, *, n_classes,
                     target_block_rows=1024):
    """readout='node' forward of newMLPe. Returns (logits, None)."""
    # edge_index / edge_attr (and edge_emb) do not affect the node-readout
    # output, so the dead edge_emb matmul is skipped entirely.
    del edge_index, edge_attr

    num_mlp = len(padded_layers) - 4        # node_emb + num_gnn_layers + 3-layer head
    relu_flags = ((False,)                  # node_emb: Linear only
                  + (True,) * num_mlp       # MLP: Linear + ReLU per layer
                  + (True, True, False))    # head: L->ReLU, L->ReLU, L

    out = fused_mlp_stack(x, padded_layers, relu_flags, n_classes,
                          target_block_rows=target_block_rows)
    return out, None


# --------------------------- Pure-JAX reference ------------------------------ #

def _reference_forward(padded_layers, relu_flags, x, n_classes,
                       compute_dtype=jnp.bfloat16):
    d_in = x.shape[1]
    din_p = padded_layers[0][0].shape[0]
    h = jnp.zeros((x.shape[0], din_p), compute_dtype).at[:, :d_in].set(
        x.astype(compute_dtype))
    y = None
    for (w, b), r in zip(padded_layers, relu_flags):
        y = jnp.dot(h, w, preferred_element_type=jnp.float32) + b
        if r:
            y = jnp.maximum(y, 0.0)
        h = y.astype(compute_dtype)
    return y[:, :n_classes]


# ---------------------------------- Main ------------------------------------ #

if __name__ == "__main__":
    # Small synthetic graph.
    num_nodes = 16
    num_edges = 24
    num_features = 4
    edge_dim = 4
    n_hidden = 32
    num_gnn_layers = 2
    n_classes = 2

    key = jax.random.PRNGKey(0)
    kx, ke, ki = jax.random.split(key, 3)
    x = jax.random.normal(kx, (num_nodes, num_features), dtype=jnp.float32)
    edge_attr = jax.random.normal(ke, (num_edges, edge_dim), dtype=jnp.float32)
    edge_index = jax.random.randint(ki, (2, num_edges), 0, num_nodes,
                                    dtype=jnp.int32)

    params = make_params(num_features, edge_dim, n_hidden, num_gnn_layers,
                         n_classes=n_classes, seed=0)
    # One-time (cached) weight padding + bf16 cast, outside the jitted forward.
    padded_layers = [(jax.device_put(w), jax.device_put(b))
                     for (w, b) in pad_params_for_kernel(params)]

    fwd = jax.jit(new_mlpe_forward,
                  static_argnames=("n_classes", "target_block_rows"))
    logits, aux = fwd(padded_layers, x, edge_index, edge_attr,
                      n_classes=n_classes)
    logits = jax.block_until_ready(logits)

    assert logits.shape == (num_nodes, n_classes), logits.shape
    assert aux is None
    assert bool(jnp.all(jnp.isfinite(logits)))

    relu_flags = ((False,) + (True,) * num_gnn_layers + (True, True, False))
    ref = _reference_forward(padded_layers, relu_flags, x, n_classes)
    np.testing.assert_allclose(np.asarray(logits), np.asarray(ref),
                               rtol=2e-2, atol=2e-2)

    print("KERNEL_OK")
</pallas_src>

<mosaic_0001>
module attributes {stable_mosaic.version = 11 : i64} {
  func.func @_fused_mlp_kernel(%arg0: i32, %arg1: memref<8x8xbf16, #tpu.memory_space<vmem>>, %arg2: memref<8x128xbf16, #tpu.memory_space<vmem>>, %arg3: memref<1x128xf32, #tpu.memory_space<vmem>>, %arg4: memref<128x128xbf16, #tpu.memory_space<vmem>>, %arg5: memref<1x128xf32, #tpu.memory_space<vmem>>, %arg6: memref<128x128xbf16, #tpu.memory_space<vmem>>, %arg7: memref<1x128xf32, #tpu.memory_space<vmem>>, %arg8: memref<128x128xbf16, #tpu.memory_space<vmem>>, %arg9: memref<1x128xf32, #tpu.memory_space<vmem>>, %arg10: memref<128x128xbf16, #tpu.memory_space<vmem>>, %arg11: memref<1x128xf32, #tpu.memory_space<vmem>>, %arg12: memref<128x128xbf16, #tpu.memory_space<vmem>>, %arg13: memref<1x128xf32, #tpu.memory_space<vmem>>, %arg14: memref<8x2xf32, #tpu.memory_space<vmem>>) attributes {dimension_semantics = [#tpu.dimension_semantics<parallel>], iteration_bounds = array<i64: 2>, scalar_prefetch = 0 : i64, scratch_operands = 0 : i64, tpu.core_type = #tpu.core_type<tc>, window_params = [{transform_indices = @transform_0, window_bounds = array<i64: 8, 8>}, {pipeline_mode = #tpu.pipeline_mode<synchronous>, transform_indices = @transform_1, window_bounds = array<i64: 8, 128>}, {pipeline_mode = #tpu.pipeline_mode<synchronous>, transform_indices = @transform_2, window_bounds = array<i64: 1, 128>}, {pipeline_mode = #tpu.pipeline_mode<synchronous>, transform_indices = @transform_3, window_bounds = array<i64: 128, 128>}, {pipeline_mode = #tpu.pipeline_mode<synchronous>, transform_indices = @transform_4, window_bounds = array<i64: 1, 128>}, {pipeline_mode = #tpu.pipeline_mode<synchronous>, transform_indices = @transform_5, window_bounds = array<i64: 128, 128>}, {pipeline_mode = #tpu.pipeline_mode<synchronous>, transform_indices = @transform_6, window_bounds = array<i64: 1, 128>}, {pipeline_mode = #tpu.pipeline_mode<synchronous>, transform_indices = @transform_7, window_bounds = array<i64: 128, 128>}, {pipeline_mode = #tpu.pipeline_mode<synchronous>, transform_indices = @transform_8, window_bounds = array<i64: 1, 128>}, {pipeline_mode = #tpu.pipeline_mode<synchronous>, transform_indices = @transform_9, window_bounds = array<i64: 128, 128>}, {pipeline_mode = #tpu.pipeline_mode<synchronous>, transform_indices = @transform_10, window_bounds = array<i64: 1, 128>}, {pipeline_mode = #tpu.pipeline_mode<synchronous>, transform_indices = @transform_11, window_bounds = array<i64: 128, 128>}, {pipeline_mode = #tpu.pipeline_mode<synchronous>, transform_indices = @transform_12, window_bounds = array<i64: 1, 128>}, {transform_indices = @transform_13, window_bounds = array<i64: 8, 2>}]} {
    %c0 = arith.constant 0 : index
    %c0_0 = arith.constant 0 : index
    %0 = vector.load %arg1[%c0, %c0_0] : memref<8x8xbf16, #tpu.memory_space<vmem>>, vector<8x8xbf16>
    %c0_1 = arith.constant 0 : index
    %c0_2 = arith.constant 0 : index
    %1 = vector.load %arg2[%c0_1, %c0_2] : memref<8x128xbf16, #tpu.memory_space<vmem>>, vector<8x128xbf16>
    %c0_3 = arith.constant 0 : index
    %c0_4 = arith.constant 0 : index
    %2 = vector.load %arg3[%c0_3, %c0_4] : memref<1x128xf32, #tpu.memory_space<vmem>>, vector<1x128xf32>
    %cst = arith.constant dense<0.000000e+00> : vector<8x128xf32>
    %3 = tpu.matmul %0, %1, %cst {dimension_numbers = #tpu.dot_dimension_numbers<[1], [0], [0], [1], [0, 0, 1, 1], [], []>} : vector<8x8xbf16>, vector<8x128xbf16>, vector<8x128xf32> -> vector<8x128xf32>
    %4 = vector.broadcast %2 : vector<1x128xf32> to vector<8x128xf32>
    %5 = arith.addf %3, %4 : vector<8x128xf32>
    %6 = arith.truncf %5 : vector<8x128xf32> to vector<8x128xbf16>
    %c0_5 = arith.constant 0 : index
    %c0_6 = arith.constant 0 : index
    %7 = vector.load %arg4[%c0_5, %c0_6] : memref<128x128xbf16, #tpu.memory_space<vmem>>, vector<128x128xbf16>
    %c0_7 = arith.constant 0 : index
    %c0_8 = arith.constant 0 : index
    %8 = vector.load %arg5[%c0_7, %c0_8] : memref<1x128xf32, #tpu.memory_space<vmem>>, vector<1x128xf32>
    %cst_9 = arith.constant dense<0.000000e+00> : vector<8x128xf32>
    %9 = tpu.matmul %6, %7, %cst_9 {dimension_numbers = #tpu.dot_dimension_numbers<[1], [0], [0], [1], [0, 0, 1, 1], [], []>} : vector<8x128xbf16>, vector<128x128xbf16>, vector<8x128xf32> -> vector<8x128xf32>
    %10 = vector.broadcast %8 : vector<1x128xf32> to vector<8x128xf32>
    %11 = arith.addf %9, %10 : vector<8x128xf32>
    %cst_10 = arith.constant 0.000000e+00 : f32
    %12 = vector.broadcast %cst_10 : f32 to vector<8x128xf32>
    %13 = arith.maximumf %11, %12 : vector<8x128xf32>
    %14 = arith.truncf %13 : vector<8x128xf32> to vector<8x128xbf16>
    %c0_11 = arith.constant 0 : index
    %c0_12 = arith.constant 0 : index
    %15 = vector.load %arg6[%c0_11, %c0_12] : memref<128x128xbf16, #tpu.memory_space<vmem>>, vector<128x128xbf16>
    %c0_13 = arith.constant 0 : index
    %c0_14 = arith.constant 0 : index
    %16 = vector.load %arg7[%c0_13, %c0_14] : memref<1x128xf32, #tpu.memory_space<vmem>>, vector<1x128xf32>
    %cst_15 = arith.constant dense<0.000000e+00> : vector<8x128xf32>
    %17 = tpu.matmul %14, %15, %cst_15 {dimension_numbers = #tpu.dot_dimension_numbers<[1], [0], [0], [1], [0, 0, 1, 1], [], []>} : vector<8x128xbf16>, vector<128x128xbf16>, vector<8x128xf32> -> vector<8x128xf32>
    %18 = vector.broadcast %16 : vector<1x128xf32> to vector<8x128xf32>
    %19 = arith.addf %17, %18 : vector<8x128xf32>
    %cst_16 = arith.constant 0.000000e+00 : f32
    %20 = vector.broadcast %cst_16 : f32 to vector<8x128xf32>
    %21 = arith.maximumf %19, %20 : vector<8x128xf32>
    %22 = arith.truncf %21 : vector<8x128xf32> to vector<8x128xbf16>
    %c0_17 = arith.constant 0 : index
    %c0_18 = arith.constant 0 : index
    %23 = vector.load %arg8[%c0_17, %c0_18] : memref<128x128xbf16, #tpu.memory_space<vmem>>, vector<128x128xbf16>
    %c0_19 = arith.constant 0 : index
    %c0_20 = arith.constant 0 : index
    %24 = vector.load %arg9[%c0_19, %c0_20] : memref<1x128xf32, #tpu.memory_space<vmem>>, vector<1x128xf32>
    %cst_21 = arith.constant dense<0.000000e+00> : vector<8x128xf32>
    %25 = tpu.matmul %22, %23, %cst_21 {dimension_numbers = #tpu.dot_dimension_numbers<[1], [0], [0], [1], [0, 0, 1, 1], [], []>} : vector<8x128xbf16>, vector<128x128xbf16>, vector<8x128xf32> -> vector<8x128xf32>
    %26 = vector.broadcast %24 : vector<1x128xf32> to vector<8x128xf32>
    %27 = arith.addf %25, %26 : vector<8x128xf32>
    %cst_22 = arith.constant 0.000000e+00 : f32
    %28 = vector.broadcast %cst_22 : f32 to vector<8x128xf32>
    %29 = arith.maximumf %27, %28 : vector<8x128xf32>
    %30 = arith.truncf %29 : vector<8x128xf32> to vector<8x128xbf16>
    %c0_23 = arith.constant 0 : index
    %c0_24 = arith.constant 0 : index
    %31 = vector.load %arg10[%c0_23, %c0_24] : memref<128x128xbf16, #tpu.memory_space<vmem>>, vector<128x128xbf16>
    %c0_25 = arith.constant 0 : index
    %c0_26 = arith.constant 0 : index
    %32 = vector.load %arg11[%c0_25, %c0_26] : memref<1x128xf32, #tpu.memory_space<vmem>>, vector<1x128xf32>
    %cst_27 = arith.constant dense<0.000000e+00> : vector<8x128xf32>
    %33 = tpu.matmul %30, %31, %cst_27 {dimension_numbers = #tpu.dot_dimension_numbers<[1], [0], [0], [1], [0, 0, 1, 1], [], []>} : vector<8x128xbf16>, vector<128x128xbf16>, vector<8x128xf32> -> vector<8x128xf32>
    %34 = vector.broadcast %32 : vector<1x128xf32> to vector<8x128xf32>
    %35 = arith.addf %33, %34 : vector<8x128xf32>
    %cst_28 = arith.constant 0.000000e+00 : f32
    %36 = vector.broadcast %cst_28 : f32 to vector<8x128xf32>
    %37 = arith.maximumf %35, %36 : vector<8x128xf32>
    %38 = arith.truncf %37 : vector<8x128xf32> to vector<8x128xbf16>
    %c0_29 = arith.constant 0 : index
    %c0_30 = arith.constant 0 : index
    %39 = vector.load %arg12[%c0_29, %c0_30] : memref<128x128xbf16, #tpu.memory_space<vmem>>, vector<128x128xbf16>
    %c0_31 = arith.constant 0 : index
    %c0_32 = arith.constant 0 : index
    %40 = vector.load %arg13[%c0_31, %c0_32] : memref<1x128xf32, #tpu.memory_space<vmem>>, vector<1x128xf32>
    %cst_33 = arith.constant dense<0.000000e+00> : vector<8x128xf32>
    %41 = tpu.matmul %38, %39, %cst_33 {dimension_numbers = #tpu.dot_dimension_numbers<[1], [0], [0], [1], [0, 0, 1, 1], [], []>} : vector<8x128xbf16>, vector<128x128xbf16>, vector<8x128xf32> -> vector<8x128xf32>
    %42 = vector.broadcast %40 : vector<1x128xf32> to vector<8x128xf32>
    %43 = arith.addf %41, %42 : vector<8x128xf32>
    %44 = vector.extract_strided_slice %43 {offsets = [0, 0], sizes = [8, 2], strides = [1, 1]} : vector<8x128xf32> to vector<8x2xf32>
    %c0_34 = arith.constant 0 : index
    %c0_35 = arith.constant 0 : index
    %45 = vector.load %arg14[%c0_34, %c0_35] : memref<8x2xf32, #tpu.memory_space<vmem>>, vector<8x2xf32>
    tpu.vector_store %arg14[%c0_34, %c0_35], %44 {strides = array<i32>} : memref<8x2xf32, #tpu.memory_space<vmem>>, vector<8x2xf32>,
    return
  }
  func.func @transform_0(%arg0: i32) -> (i32, i32) {
    %c0_i32 = arith.constant 0 : i32
    %c0_i32_0 = arith.constant 0 : i32
    return %arg0, %c0_i32 : i32, i32
  }
  func.func @transform_1(%arg0: i32) -> (i32, i32) {
    %c0_i32 = arith.constant 0 : i32
    %c0_i32_0 = arith.constant 0 : i32
    %c0_i32_1 = arith.constant 0 : i32
    return %c0_i32, %c0_i32_0 : i32, i32
  }
  func.func @transform_2(%arg0: i32) -> (i32, i32) {
    %c0_i32 = arith.constant 0 : i32
    %c0_i32_0 = arith.constant 0 : i32
    %c0_i32_1 = arith.constant 0 : i32
    return %c0_i32, %c0_i32_0 : i32, i32
  }
  func.func @transform_3(%arg0: i32) -> (i32, i32) {
    %c0_i32 = arith.constant 0 : i32
    %c0_i32_0 = arith.constant 0 : i32
    %c0_i32_1 = arith.constant 0 : i32
    return %c0_i32, %c0_i32_0 : i32, i32
  }
  func.func @transform_4(%arg0: i32) -> (i32, i32) {
    %c0_i32 = arith.constant 0 : i32
    %c0_i32_0 = arith.constant 0 : i32
    %c0_i32_1 = arith.constant 0 : i32
    return %c0_i32, %c0_i32_0 : i32, i32
  }
  func.func @transform_5(%arg0: i32) -> (i32, i32) {
    %c0_i32 = arith.constant 0 : i32
    %c0_i32_0 = arith.constant 0 : i32
    %c0_i32_1 = arith.constant 0 : i32
    return %c0_i32, %c0_i32_0 : i32, i32
  }
  func.func @transform_6(%arg0: i32) -> (i32, i32) {
    %c0_i32 = arith.constant 0 : i32
    %c0_i32_0 = arith.constant 0 : i32
    %c0_i32_1 = arith.constant 0 : i32
    return %c0_i32, %c0_i32_0 : i32, i32
  }
  func.func @transform_7(%arg0: i32) -> (i32, i32) {
    %c0_i32 = arith.constant 0 : i32
    %c0_i32_0 = arith.constant 0 : i32
    %c0_i32_1 = arith.constant 0 : i32
    return %c0_i32, %c0_i32_0 : i32, i32
  }
  func.func @transform_8(%arg0: i32) -> (i32, i32) {
    %c0_i32 = arith.constant 0 : i32
    %c0_i32_0 = arith.constant 0 : i32
    %c0_i32_1 = arith.constant 0 : i32
    return %c0_i32, %c0_i32_0 : i32, i32
  }
  func.func @transform_9(%arg0: i32) -> (i32, i32) {
    %c0_i32 = arith.constant 0 : i32
    %c0_i32_0 = arith.constant 0 : i32
    %c0_i32_1 = arith.constant 0 : i32
    return %c0_i32, %c0_i32_0 : i32, i32
  }
  func.func @transform_10(%arg0: i32) -> (i32, i32) {
    %c0_i32 = arith.constant 0 : i32
    %c0_i32_0 = arith.constant 0 : i32
    %c0_i32_1 = arith.constant 0 : i32
    return %c0_i32, %c0_i32_0 : i32, i32
  }
  func.func @transform_11(%arg0: i32) -> (i32, i32) {
    %c0_i32 = arith.constant 0 : i32
    %c0_i32_0 = arith.constant 0 : i32
    %c0_i32_1 = arith.constant 0 : i32
    return %c0_i32, %c0_i32_0 : i32, i32
  }
  func.func @transform_12(%arg0: i32) -> (i32, i32) {
    %c0_i32 = arith.constant 0 : i32
    %c0_i32_0 = arith.constant 0 : i32
    %c0_i32_1 = arith.constant 0 : i32
    return %c0_i32, %c0_i32_0 : i32, i32
  }
  func.func @transform_13(%arg0: i32) -> (i32, i32) {
    %c0_i32 = arith.constant 0 : i32
    %c0_i32_0 = arith.constant 0 : i32
    return %arg0, %c0_i32 : i32, i32
  }
}

</mosaic_0001>

<llo_original>
// kernel: new_mlpe_forward.1
$region0: #{new_mlpe_forward.1}
  #allocation0 [shape = 'u32[]', space=smem, size = 0x4, offset = 0x4, fixed_abs, tag = 'smem constant byte address 0x4 - core index']
  #allocation1 [shape = 'u32[144,128]{1,0:T(1,128)}', space=vmem, size = 0x12000, scoped, tag = 'internal scratch']
  %s0 = inlined_call_operand.vmem [shape: bf16[16,8], index: 0, kind: input, shape index: {}]
  %s1 = inlined_call_operand.hbm [shape: bf16[8,128], index: 1, kind: input, shape index: {}]
  %s2 = inlined_call_operand.vmem [shape: f32[1,128], index: 2, kind: input, shape index: {}]
  %s3 = inlined_call_operand.hbm [shape: bf16[128,128], index: 3, kind: input, shape index: {}]
  %s4 = inlined_call_operand.hbm [shape: f32[1,128], index: 4, kind: input, shape index: {}]
  %s5 = inlined_call_operand.hbm [shape: bf16[128,128], index: 5, kind: input, shape index: {}]
  %s6 = inlined_call_operand.hbm [shape: f32[1,128], index: 6, kind: input, shape index: {}]
  %s7 = inlined_call_operand.hbm [shape: bf16[128,128], index: 7, kind: input, shape index: {}]
  %s8 = inlined_call_operand.hbm [shape: f32[1,128], index: 8, kind: input, shape index: {}]
  %s9 = inlined_call_operand.hbm [shape: bf16[128,128], index: 9, kind: input, shape index: {}]
  %s10 = inlined_call_operand.hbm [shape: f32[1,128], index: 10, kind: input, shape index: {}]
  %s11 = inlined_call_operand.vmem [shape: bf16[128,128], index: 11, kind: input, shape index: {}]
  %s12 = inlined_call_operand.hbm [shape: f32[1,128], index: 12, kind: input, shape index: {}]
  %s13 = inlined_call_operand.vmem [shape: f32[16,2], index: 13, kind: output, shape index: {}]
  %s14 = sld [smem:[#allocation0]]
  $region125: #{new_mlpe_forward.1} parent=0
    _
  %s16 = ssub.s32 1, %s14
  %s17 = scalar_select 0, %s16, %s14
  $region1: #{new_mlpe_forward.1} parent=0
    #allocation2 [shape = 'u8[2048]{0}', space=vmem, size = 0x800, scoped, tag = 'input window, operand 1, single buffered']
    #allocation3 [shape = 's32[2]{0}', space=sflag, size = 0x8, scoped, tag = 'scoped memory for new_mlpe_forward.1']
    #allocation4 [shape = 'u8[32768]{0}', space=vmem, size = 0x8000, scoped, tag = 'input window, operand 3, single buffered']
    #allocation5 [shape = 's32[1]{0}', space=sflag, size = 0x4, scoped, tag = 'scoped memory for new_mlpe_forward.1']
    #allocation6 [shape = 'u8[512]{0}', space=vmem, size = 0x400, scoped, tag = 'input window, operand 4, single buffered']
    #allocation7 [shape = 'u8[32768]{0}', space=vmem, size = 0x8000, scoped, tag = 'input window, operand 5, single buffered']
    #allocation8 [shape = 's32[1]{0}', space=sflag, size = 0x4, scoped, tag = 'scoped memory for new_mlpe_forward.1']
    #allocation9 [shape = 'u8[512]{0}', space=vmem, size = 0x400, scoped, tag = 'input window, operand 6, single buffered']
    #allocation10 [shape = 'u8[32768]{0}', space=vmem, size = 0x8000, scoped, tag = 'input window, operand 7, single buffered']
    #allocation11 [shape = 's32[1]{0}', space=sflag, size = 0x4, scoped, tag = 'scoped memory for new_mlpe_forward.1']
    #allocation12 [shape = 'u8[512]{0}', space=vmem, size = 0x400, scoped, tag = 'input window, operand 8, single buffered']
    #allocation13 [shape = 'u8[32768]{0}', space=vmem, size = 0x8000, scoped, tag = 'input window, operand 9, single buffered']
    #allocation14 [shape = 's32[1]{0}', space=sflag, size = 0x4, scoped, tag = 'scoped memory for new_mlpe_forward.1']
    #allocation15 [shape = 'u8[512]{0}', space=vmem, size = 0x400, scoped, tag = 'input window, operand 10, single buffered']
    #allocation16 [shape = 'u8[512]{0}', space=vmem, size = 0x400, scoped, tag = 'input window, operand 12, single buffered']
    #allocation17 [shape = 's32[1]{0}', space=sflag, size = 0x4, scoped, tag = 'scoped memory for new_mlpe_forward.1']
    %18 = vsyncpa [#allocation3], 0
    %19 = vsyncpa [#allocation5], 0
    %20 = vsyncpa [#allocation8], 0
    %21 = vsyncpa [#allocation11], 0
    %22 = vsyncpa [#allocation14], 0
    %23 = vsyncpa [#allocation17], 0
    loop: start=0, step=1, limit=4
    $region2: #{new_mlpe_forward.1} parent=1 // loop_pre_header
      _
    $region3: #{new_mlpe_forward.1} parent=1 // loop_header
      %s25 = sphi 0, %s29
      %p26 = scmp.ge.s32.totalorder %s25, 4
      %s35 = sphi 0, %s37
      %s38 = sphi 0, %s35
      %s39 = sphi 0, %s38
      %s55 = sphi 0, %s39
      %s59 = sphi 0, %s59
      %s61 = sphi 0, %s59
      %s62 = sphi 0, %s61
      %s76 = sphi 0, %s62
      %s80 = sphi 0, %s80
      %s82 = sphi 0, %s80
      %s83 = sphi 0, %s82
      %s97 = sphi 0, %s83
      %s101 = sphi 0, %s101
      %s103 = sphi 0, %s101
      %s104 = sphi 0, %s103
      %s118 = sphi 0, %s104
      %s122 = sphi 0, %s122
      %s124 = sphi 0, %s122
      %s125 = sphi 0, %s124
      %s139 = sphi 0, %s125
      %s143 = sphi 0, %s143
      %s145 = sphi 0, %s143
      %s146 = sphi 0, %s145
      %s160 = sphi 0, %s146
      %s164 = sphi 0, %s164
      %s166 = sphi 0, %s164
      %s167 = sphi 0, %s166
      %s181 = sphi 0, %s167
      %s185 = sphi 0, %s185
      %s187 = sphi 0, %s185
      %s188 = sphi 0, %s187
      %s202 = sphi 0, %s188
      %s206 = sphi 0, %s206
      %s208 = sphi 0, %s206
      %s209 = sphi 0, %s208
      %s223 = sphi 0, %s209
      %s227 = sphi 0, %s227
      %s229 = sphi 0, %s227
      %s230 = sphi 0, %s229
      %s244 = sphi 0, %s230
      %s248 = sphi 0, %s248
      %s250 = sphi 0, %s248
      %s251 = sphi 0, %s250
      %s265 = sphi 0, %s251
      %s269 = sphi 0, %s269
      %s271 = sphi 0, %s269
      %s272 = sphi 0, %s271
      %s286 = sphi 0, %s272
      %s290 = sphi 0, %s290
      %s292 = sphi 0, %s290
      %s293 = sphi 0, %s292
      %s307 = sphi 0, %s293
      %s313 = sphi 0, %s315
      %s316 = sphi 0, %s313
      %s317 = sphi 0, %s316
      %s333 = sphi 0, %s317
    $region4: #{new_mlpe_forward.1} parent=1 // loop_header_branch
      %28 = sbr.rel (%p26) target = $region8
    $region5: #{new_mlpe_forward.1} parent=1 // loop_body
      %s30 = ssub.s32 %s25, 1
      %s31 = ssub.s32 %s25, 2
      %s32 = sadd.s32 %s25, 1
      %s33 = ssub.s32 %s25, %s32
      %p34 = scmp.eq.s32.totalorder %s33, 0
      %s36 = sadd.s32 %s35, 1
      %s37 = scalar_select %p34, %s35, %s36
      %p40 = pneg %p34
      %p41 = scmp.eq.s32.totalorder %s25, 1
      %p42 = por %p40, %p41
      %p43 = scmp.ne.s32.totalorder %s35, %s38
      %p44 = scmp.eq.s32.totalorder %s25, 0
      %p45 = por %p43, %p44
      %p46 = scmp.ne.s32.totalorder %s35, %s38
      %p47 = scmp.eq.s32.totalorder %s30, 1
      %p48 = por %p46, %p47
      %p49 = scmp.ne.s32.totalorder %s38, %s39
      %p50 = scmp.eq.s32.totalorder %s30, 0
      %p51 = por %p49, %p50
      %p52 = scmp.ne.s32.totalorder %s38, %s39
      %p53 = scmp.eq.s32.totalorder %s31, 1
      %p54 = por %p52, %p53
      %p56 = scmp.ne.s32.totalorder %s39, %s55
      %p57 = scmp.eq.s32.totalorder %s31, 0
      %p58 = por %p56, %p57
      %s60 = sadd.s32 %s59, 1
      %p63 = scmp.eq.s32.totalorder %s25, 1
      %p64 = scmp.ne.s32.totalorder %s59, %s61
      %p65 = scmp.eq.s32.totalorder %s25, 0
      %p66 = por %p64, %p65
      %p67 = scmp.ne.s32.totalorder %s59, %s61
      %p68 = scmp.eq.s32.totalorder %s30, 1
      %p69 = por %p67, %p68
      %p70 = scmp.ne.s32.totalorder %s61, %s62
      %p71 = scmp.eq.s32.totalorder %s30, 0
      %p72 = por %p70, %p71
      %p73 = scmp.ne.s32.totalorder %s61, %s62
      %p74 = scmp.eq.s32.totalorder %s31, 1
      %p75 = por %p73, %p74
      %p77 = scmp.ne.s32.totalorder %s62, %s76
      %p78 = scmp.eq.s32.totalorder %s31, 0
      %p79 = por %p77, %p78
      %s81 = sadd.s32 %s80, 1
      %p84 = scmp.eq.s32.totalorder %s25, 1
      %p85 = scmp.ne.s32.totalorder %s80, %s82
      %p86 = scmp.eq.s32.totalorder %s25, 0
      %p87 = por %p85, %p86
      %p88 = scmp.ne.s32.totalorder %s80, %s82
      %p89 = scmp.eq.s32.totalorder %s30, 1
      %p90 = por %p88, %p89
      %p91 = scmp.ne.s32.totalorder %s82, %s83
      %p92 = scmp.eq.s32.totalorder %s30, 0
      %p93 = por %p91, %p92
      %p94 = scmp.ne.s32.totalorder %s82, %s83
      %p95 = scmp.eq.s32.totalorder %s31, 1
      %p96 = por %p94, %p95
      %p98 = scmp.ne.s32.totalorder %s83, %s97
      %p99 = scmp.eq.s32.totalorder %s31, 0
      %p100 = por %p98, %p99
      %s102 = sadd.s32 %s101, 1
      %p105 = scmp.eq.s32.totalorder %s25, 1
      %p106 = scmp.ne.s32.totalorder %s101, %s103
      %p107 = scmp.eq.s32.totalorder %s25, 0
      %p108 = por %p106, %p107
      %p109 = scmp.ne.s32.totalorder %s101, %s103
      %p110 = scmp.eq.s32.totalorder %s30, 1
      %p111 = por %p109, %p110
      %p112 = scmp.ne.s32.totalorder %s103, %s104
      %p113 = scmp.eq.s32.totalorder %s30, 0
      %p114 = por %p112, %p113
      %p115 = scmp.ne.s32.totalorder %s103, %s104
      %p116 = scmp.eq.s32.totalorder %s31, 1
      %p117 = por %p115, %p116
      %p119 = scmp.ne.s32.totalorder %s104, %s118
      %p120 = scmp.eq.s32.totalorder %s31, 0
      %p121 = por %p119, %p120
      %s123 = sadd.s32 %s122, 1
      %p126 = scmp.eq.s32.totalorder %s25, 1
      %p127 = scmp.ne.s32.totalorder %s122, %s124
      %p128 = scmp.eq.s32.totalorder %s25, 0
      %p129 = por %p127, %p128
      %p130 = scmp.ne.s32.totalorder %s122, %s124
      %p131 = scmp.eq.s32.totalorder %s30, 1
      %p132 = por %p130, %p131
      %p133 = scmp.ne.s32.totalorder %s124, %s125
      %p134 = scmp.eq.s32.totalorder %s30, 0
      %p135 = por %p133, %p134
      %p136 = scmp.ne.s32.totalorder %s124, %s125
      %p137 = scmp.eq.s32.totalorder %s31, 1
      %p138 = por %p136, %p137
      %p140 = scmp.ne.s32.totalorder %s125, %s139
      %p141 = scmp.eq.s32.totalorder %s31, 0
      %p142 = por %p140, %p141
      %s144 = sadd.s32 %s143, 1
      %p147 = scmp.eq.s32.totalorder %s25, 1
      %p148 = scmp.ne.s32.totalorder %s143, %s145
      %p149 = scmp.eq.s32.totalorder %s25, 0
      %p150 = por %p148, %p149
      %p151 = scmp.ne.s32.totalorder %s143, %s145
      %p152 = scmp.eq.s32.totalorder %s30, 1
      %p153 = por %p151, %p152
      %p154 = scmp.ne.s32.totalorder %s145, %s146
      %p155 = scmp.eq.s32.totalorder %s30, 0
      %p156 = por %p154, %p155
      %p157 = scmp.ne.s32.totalorder %s145, %s146
      %p158 = scmp.eq.s32.totalorder %s31, 1
      %p159 = por %p157, %p158
      %p161 = scmp.ne.s32.totalorder %s146, %s160
      %p162 = scmp.eq.s32.totalorder %s31, 0
      %p163 = por %p161, %p162
      %s165 = sadd.s32 %s164, 1
      %p168 = scmp.eq.s32.totalorder %s25, 1
      %p169 = scmp.ne.s32.totalorder %s164, %s166
      %p170 = scmp.eq.s32.totalorder %s25, 0
      %p171 = por %p169, %p170
      %p172 = scmp.ne.s32.totalorder %s164, %s166
      %p173 = scmp.eq.s32.totalorder %s30, 1
      %p174 = por %p172, %p173
      %p175 = scmp.ne.s32.totalorder %s166, %s167
      %p176 = scmp.eq.s32.totalorder %s30, 0
      %p177 = por %p175, %p176
      %p178 = scmp.ne.s32.totalorder %s166, %s167
      %p179 = scmp.eq.s32.totalorder %s31, 1
      %p180 = por %p178, %p179
      %p182 = scmp.ne.s32.totalorder %s167, %s181
      %p183 = scmp.eq.s32.totalorder %s31, 0
      %p184 = por %p182, %p183
      %s186 = sadd.s32 %s185, 1
      %p189 = scmp.eq.s32.totalorder %s25, 1
      %p190 = scmp.ne.s32.totalorder %s185, %s187
      %p191 = scmp.eq.s32.totalorder %s25, 0
      %p192 = por %p190, %p191
      %p193 = scmp.ne.s32.totalorder %s185, %s187
      %p194 = scmp.eq.s32.totalorder %s30, 1
      %p195 = por %p193, %p194
      %p196 = scmp.ne.s32.totalorder %s187, %s188
      %p197 = scmp.eq.s32.totalorder %s30, 0
      %p198 = por %p196, %p197
      %p199 = scmp.ne.s32.totalorder %s187, %s188
      %p200 = scmp.eq.s32.totalorder %s31, 1
      %p201 = por %p199, %p200
      %p203 = scmp.ne.s32.totalorder %s188, %s202
      %p204 = scmp.eq.s32.totalorder %s31, 0
      %p205 = por %p203, %p204
      %s207 = sadd.s32 %s206, 1
      %p210 = scmp.eq.s32.totalorder %s25, 1
      %p211 = scmp.ne.s32.totalorder %s206, %s208
      %p212 = scmp.eq.s32.totalorder %s25, 0
      %p213 = por %p211, %p212
      %p214 = scmp.ne.s32.totalorder %s206, %s208
      %p215 = scmp.eq.s32.totalorder %s30, 1
      %p216 = por %p214, %p215
      %p217 = scmp.ne.s32.totalorder %s208, %s209
      %p218 = scmp.eq.s32.totalorder %s30, 0
      %p219 = por %p217, %p218
      %p220 = scmp.ne.s32.totalorder %s208, %s209
      %p221 = scmp.eq.s32.totalorder %s31, 1
      %p222 = por %p220, %p221
      %p224 = scmp.ne.s32.totalorder %s209, %s223
      %p225 = scmp.eq.s32.totalorder %s31, 0
      %p226 = por %p224, %p225
      %s228 = sadd.s32 %s227, 1
      %p231 = scmp.eq.s32.totalorder %s25, 1
      %p232 = scmp.ne.s32.totalorder %s227, %s229
      %p233 = scmp.eq.s32.totalorder %s25, 0
      %p234 = por %p232, %p233
      %p235 = scmp.ne.s32.totalorder %s227, %s229
      %p236 = scmp.eq.s32.totalorder %s30, 1
      %p237 = por %p235, %p236
      %p238 = scmp.ne.s32.totalorder %s229, %s230
      %p239 = scmp.eq.s32.totalorder %s30, 0
      %p240 = por %p238, %p239
      %p241 = scmp.ne.s32.totalorder %s229, %s230
      %p242 = scmp.eq.s32.totalorder %s31, 1
      %p243 = por %p241, %p242
      %p245 = scmp.ne.s32.totalorder %s230, %s244
      %p246 = scmp.eq.s32.totalorder %s31, 0
      %p247 = por %p245, %p246
      %s249 = sadd.s32 %s248, 1
      %p252 = scmp.eq.s32.totalorder %s25, 1
      %p253 = scmp.ne.s32.totalorder %s248, %s250
      %p254 = scmp.eq.s32.totalorder %s25, 0
      %p255 = por %p253, %p254
      %p256 = scmp.ne.s32.totalorder %s248, %s250
      %p257 = scmp.eq.s32.totalorder %s30, 1
      %p258 = por %p256, %p257
      %p259 = scmp.ne.s32.totalorder %s250, %s251
      %p260 = scmp.eq.s32.totalorder %s30, 0
      %p261 = por %p259, %p260
      %p262 = scmp.ne.s32.totalorder %s250, %s251
      %p263 = scmp.eq.s32.totalorder %s31, 1
      %p264 = por %p262, %p263
      %p266 = scmp.ne.s32.totalorder %s251, %s265
      %p267 = scmp.eq.s32.totalorder %s31, 0
      %p268 = por %p266, %p267
      %s270 = sadd.s32 %s269, 1
      %p273 = scmp.eq.s32.totalorder %s25, 1
      %p274 = scmp.ne.s32.totalorder %s269, %s271
      %p275 = scmp.eq.s32.totalorder %s25, 0
      %p276 = por %p274, %p275
      %p277 = scmp.ne.s32.totalorder %s269, %s271
      %p278 = scmp.eq.s32.totalorder %s30, 1
      %p279 = por %p277, %p278
      %p280 = scmp.ne.s32.totalorder %s271, %s272
      %p281 = scmp.eq.s32.totalorder %s30, 0
      %p282 = por %p280, %p281
      %p283 = scmp.ne.s32.totalorder %s271, %s272
      %p284 = scmp.eq.s32.totalorder %s31, 1
      %p285 = por %p283, %p284
      %p287 = scmp.ne.s32.totalorder %s272, %s286
      %p288 = scmp.eq.s32.totalorder %s31, 0
      %p289 = por %p287, %p288
      %s291 = sadd.s32 %s290, 1
      %p294 = scmp.eq.s32.totalorder %s25, 1
      %p295 = scmp.ne.s32.totalorder %s290, %s292
      %p296 = scmp.eq.s32.totalorder %s25, 0
      %p297 = por %p295, %p296
      %p298 = scmp.ne.s32.totalorder %s290, %s292
      %p299 = scmp.eq.s32.totalorder %s30, 1
      %p300 = por %p298, %p299
      %p301 = scmp.ne.s32.totalorder %s292, %s293
      %p302 = scmp.eq.s32.totalorder %s30, 0
      %p303 = por %p301, %p302
      %p304 = scmp.ne.s32.totalorder %s292, %s293
      %p305 = scmp.eq.s32.totalorder %s31, 1
      %p306 = por %p304, %p305
      %p308 = scmp.ne.s32.totalorder %s293, %s307
      %p309 = scmp.eq.s32.totalorder %s31, 0
      %p310 = por %p308, %p309
      %s311 = ssub.s32 %s25, %s32
      %p312 = scmp.eq.s32.totalorder %s311, 0
      %s314 = sadd.s32 %s313, 1
      %s315 = scalar_select %p312, %s313, %s314
      %p318 = pneg %p312
      %p319 = scmp.eq.s32.totalorder %s25, 1
      %p320 = por %p318, %p319
      %p321 = scmp.ne.s32.totalorder %s313, %s316
      %p322 = scmp.eq.s32.totalorder %s25, 0
      %p323 = por %p321, %p322
      %p324 = scmp.ne.s32.totalorder %s313, %s316
      %p325 = scmp.eq.s32.totalorder %s30, 1
      %p326 = por %p324, %p325
      %p327 = scmp.ne.s32.totalorder %s316, %s317
      %p328 = scmp.eq.s32.totalorder %s30, 0
      %p329 = por %p327, %p328
      %p330 = scmp.ne.s32.totalorder %s316, %s317
      %p331 = scmp.eq.s32.totalorder %s31, 1
      %p332 = por %p330, %p331
      %p334 = scmp.ne.s32.totalorder %s317, %s333
      %p335 = scmp.eq.s32.totalorder %s31, 0
      %p336 = por %p334, %p335
      %p337 = scmp.le.s32.totalorder 1, %s25
      %p338 = scmp.lt.s32.totalorder %s25, 3
      %p339 = pnand %p337, %p338
      %p340 = pneg %p339
      // Predicated region
      $region9: #{new_mlpe_forward.1} parent=5 // pred_check
        _
      $region10: #{new_mlpe_forward.1} parent=5 // pred_check_branch
        %342 = sbr.rel (%p339) target = $region12
      $region11: #{new_mlpe_forward.1} parent=5 // pred_region
        %s343 = ssub.s32 %s25, 1
        // Predicated region
        $region13: #{new_mlpe_forward.1} parent=11 // pred_check
          %p344 = pneg %p72
        $region14: #{new_mlpe_forward.1} parent=11 // pred_check_branch
          %346 = sbr.rel (%p344) target = $region16
        $region15: #{new_mlpe_forward.1} parent=11 // pred_region
          %s348 = ssub.s32 64, 64
          %349 = vsyncadd [#allocation3], %s348
          %s351 = sshll.u32 [#allocation2], 4
          %s352 = int_to_ptr.vmem [resolvable:$true] %s351
          %354 = dma.hbm_to_vmem [thread:$0]  %s1, 64, %s352, [#allocation3]
        $region16: #{new_mlpe_forward.1} parent=11 // pred_fallthru
          _
        // Predicated region
        $region17: #{new_mlpe_forward.1} parent=11 // pred_check
          %p355 = pneg %p93
        $region18: #{new_mlpe_forward.1} parent=11 // pred_check_branch
          %357 = sbr.rel (%p355) target = $region20
        $region19: #{new_mlpe_forward.1} parent=11 // pred_region
          _
        $region20: #{new_mlpe_forward.1} parent=11 // pred_fallthru
          _
        // Predicated region
        $region21: #{new_mlpe_forward.1} parent=11 // pred_check
          %p358 = pneg %p114
        $region22: #{new_mlpe_forward.1} parent=11 // pred_check_branch
          %360 = sbr.rel (%p358) target = $region24
        $region23: #{new_mlpe_forward.1} parent=11 // pred_region
          %s362 = ssub.s32 1024, 1024
          %363 = vsyncadd [#allocation5], %s362
          %s364 = sshll.u32 [#allocation4], 4
          %s365 = int_to_ptr.vmem [resolvable:$true] %s364
          %370 = dma.hbm_to_vmem [thread:$0]  %s3, 1024, %s365, [#allocation5], 64, 64, 4
        $region24: #{new_mlpe_forward.1} parent=11 // pred_fallthru
          _
        // Predicated region
        $region25: #{new_mlpe_forward.1} parent=11 // pred_check
          %p371 = pneg %p135
        $region26: #{new_mlpe_forward.1} parent=11 // pred_check_branch
          %373 = sbr.rel (%p371) target = $region28
        $region27: #{new_mlpe_forward.1} parent=11 // pred_region
          %s375 = ssub.s32 16, 16
          %376 = vsyncadd [#allocation5], %s375
          %s378 = sshll.u32 [#allocation6], 4
          %s379 = int_to_ptr.vmem [resolvable:$true] %s378
          %381 = dma.hbm_to_vmem [thread:$0]  %s4, 16, %s379, [#allocation5]
        $region28: #{new_mlpe_forward.1} parent=11 // pred_fallthru
          _
        // Predicated region
        $region29: #{new_mlpe_forward.1} parent=11 // pred_check
          %p382 = pneg %p156
        $region30: #{new_mlpe_forward.1} parent=11 // pred_check_branch
          %384 = sbr.rel (%p382) target = $region32
        $region31: #{new_mlpe_forward.1} parent=11 // pred_region
          %s386 = ssub.s32 1024, 1024
          %387 = vsyncadd [#allocation8], %s386
          %s388 = sshll.u32 [#allocation7], 4
          %s389 = int_to_ptr.vmem [resolvable:$true] %s388
          %394 = dma.hbm_to_vmem [thread:$0]  %s5, 1024, %s389, [#allocation8], 64, 64, 4
        $region32: #{new_mlpe_forward.1} parent=11 // pred_fallthru
          _
        // Predicated region
        $region33: #{new_mlpe_forward.1} parent=11 // pred_check
          %p395 = pneg %p177
        $region34: #{new_mlpe_forward.1} parent=11 // pred_check_branch
          %397 = sbr.rel (%p395) target = $region36
        $region35: #{new_mlpe_forward.1} parent=11 // pred_region
          %s399 = ssub.s32 16, 16
          %400 = vsyncadd [#allocation8], %s399
          %s402 = sshll.u32 [#allocation9], 4
          %s403 = int_to_ptr.vmem [resolvable:$true] %s402
          %405 = dma.hbm_to_vmem [thread:$0]  %s6, 16, %s403, [#allocation8]
        $region36: #{new_mlpe_forward.1} parent=11 // pred_fallthru
          _
        // Predicated region
        $region37: #{new_mlpe_forward.1} parent=11 // pred_check
          %p406 = pneg %p198
        $region38: #{new_mlpe_forward.1} parent=11 // pred_check_branch
          %408 = sbr.rel (%p406) target = $region40
        $region39: #{new_mlpe_forward.1} parent=11 // pred_region
          %s410 = ssub.s32 1024, 1024
          %411 = vsyncadd [#allocation11], %s410
          %s412 = sshll.u32 [#allocation10], 4
          %s413 = int_to_ptr.vmem [resolvable:$true] %s412
          %418 = dma.hbm_to_vmem [thread:$0]  %s7, 1024, %s413, [#allocation11], 64, 64, 4
        $region40: #{new_mlpe_forward.1} parent=11 // pred_fallthru
          _
        // Predicated region
        $region41: #{new_mlpe_forward.1} parent=11 // pred_check
          %p419 = pneg %p219
        $region42: #{new_mlpe_forward.1} parent=11 // pred_check_branch
          %421 = sbr.rel (%p419) target = $region44
        $region43: #{new_mlpe_forward.1} parent=11 // pred_region
          %s423 = ssub.s32 16, 16
          %424 = vsyncadd [#allocation11], %s423
          %s426 = sshll.u32 [#allocation12], 4
          %s427 = int_to_ptr.vmem [resolvable:$true] %s426
          %429 = dma.hbm_to_vmem [thread:$0]  %s8, 16, %s427, [#allocation11]
        $region44: #{new_mlpe_forward.1} parent=11 // pred_fallthru
          _
        // Predicated region
        $region45: #{new_mlpe_forward.1} parent=11 // pred_check
          %p430 = pneg %p240
        $region46: #{new_mlpe_forward.1} parent=11 // pred_check_branch
          %432 = sbr.rel (%p430) target = $region48
        $region47: #{new_mlpe_forward.1} parent=11 // pred_region
          %s434 = ssub.s32 1024, 1024
          %435 = vsyncadd [#allocation14], %s434
          %s436 = sshll.u32 [#allocation13], 4
          %s437 = int_to_ptr.vmem [resolvable:$true] %s436
          %442 = dma.hbm_to_vmem [thread:$0]  %s9, 1024, %s437, [#allocation14], 64, 64, 4
        $region48: #{new_mlpe_forward.1} parent=11 // pred_fallthru
          _
        // Predicated region
        $region49: #{new_mlpe_forward.1} parent=11 // pred_check
          %p443 = pneg %p261
        $region50: #{new_mlpe_forward.1} parent=11 // pred_check_branch
          %445 = sbr.rel (%p443) target = $region52
        $region51: #{new_mlpe_forward.1} parent=11 // pred_region
          %s447 = ssub.s32 16, 16
          %448 = vsyncadd [#allocation14], %s447
          %s450 = sshll.u32 [#allocation15], 4
          %s451 = int_to_ptr.vmem [resolvable:$true] %s450
          %453 = dma.hbm_to_vmem [thread:$0]  %s10, 16, %s451, [#allocation14]
        $region52: #{new_mlpe_forward.1} parent=11 // pred_fallthru
          _
        // Predicated region
        $region53: #{new_mlpe_forward.1} parent=11 // pred_check
          %p454 = pneg %p282
        $region54: #{new_mlpe_forward.1} parent=11 // pred_check_branch
          %456 = sbr.rel (%p454) target = $region56
        $region55: #{new_mlpe_forward.1} parent=11 // pred_region
          _
        $region56: #{new_mlpe_forward.1} parent=11 // pred_fallthru
          _
        // Predicated region
        $region57: #{new_mlpe_forward.1} parent=11 // pred_check
          %p457 = pneg %p303
        $region58: #{new_mlpe_forward.1} parent=11 // pred_check_branch
          %459 = sbr.rel (%p457) target = $region60
        $region59: #{new_mlpe_forward.1} parent=11 // pred_region
          %s461 = ssub.s32 16, 16
          %462 = vsyncadd [#allocation17], %s461
          %s464 = sshll.u32 [#allocation16], 4
          %s465 = int_to_ptr.vmem [resolvable:$true] %s464
          %467 = dma.hbm_to_vmem [thread:$0]  %s12, 16, %s465, [#allocation17]
        $region60: #{new_mlpe_forward.1} parent=11 // pred_fallthru
          _
      $region12: #{new_mlpe_forward.1} parent=5 // pred_fallthru
        _
      %p468 = scmp.lt.s32.totalorder %s25, 2
      // Predicated region
      $region61: #{new_mlpe_forward.1} parent=5 // pred_check
        %p469 = pneg %p468
      $region62: #{new_mlpe_forward.1} parent=5 // pred_check_branch
        %471 = sbr.rel (%p469) target = $region64
      $region63: #{new_mlpe_forward.1} parent=5 // pred_region
        // Predicated region
        $region65: #{new_mlpe_forward.1} parent=63 // pred_check
          %p472 = pneg %p45
        $region66: #{new_mlpe_forward.1} parent=63 // pred_check_branch
          %474 = sbr.rel (%p472) target = $region68
        $region67: #{new_mlpe_forward.1} parent=63 // pred_region
          %p475 = scmp.lt.s32.totalorder %s25, 1
          %s476 = scalar_select %p475, %s25, 1
          %s477 = smul.addr %s476, 4
          %s478 = scalar_lea.vmem %s0, %s477
        $region68: #{new_mlpe_forward.1} parent=63 // pred_fallthru
          _
      $region64: #{new_mlpe_forward.1} parent=5 // pred_fallthru
        _
      %p479 = scmp.le.s32.totalorder 1, %s25
      %p480 = scmp.lt.s32.totalorder %s25, 3
      %p481 = pnand %p479, %p480
      %p482 = pneg %p481
      // Predicated region
      $region69: #{new_mlpe_forward.1} parent=5 // pred_check
        _
      $region70: #{new_mlpe_forward.1} parent=5 // pred_check_branch
        %484 = sbr.rel (%p481) target = $region72
      $region71: #{new_mlpe_forward.1} parent=5 // pred_region
        %s485 = ssub.s32 %s25, 1
        // Predicated region
        $region73: #{new_mlpe_forward.1} parent=71 // pred_check
          %p486 = pneg %p72
        $region74: #{new_mlpe_forward.1} parent=71 // pred_check_branch
          %488 = sbr.rel (%p486) target = $region76
        $region75: #{new_mlpe_forward.1} parent=71 // pred_region
          %489 = dma.done [#allocation3], 64
        $region76: #{new_mlpe_forward.1} parent=71 // pred_fallthru
          _
        // Predicated region
        $region77: #{new_mlpe_forward.1} parent=71 // pred_check
          %p490 = pneg %p114
        $region78: #{new_mlpe_forward.1} parent=71 // pred_check_branch
          %492 = sbr.rel (%p490) target = $region80
        $region79: #{new_mlpe_forward.1} parent=71 // pred_region
          %493 = dma.done [#allocation5], 1024
        $region80: #{new_mlpe_forward.1} parent=71 // pred_fallthru
          _
        // Predicated region
        $region81: #{new_mlpe_forward.1} parent=71 // pred_check
          %p494 = pneg %p135
        $region82: #{new_mlpe_forward.1} parent=71 // pred_check_branch
          %496 = sbr.rel (%p494) target = $region84
        $region83: #{new_mlpe_forward.1} parent=71 // pred_region
          %497 = dma.done [#allocation5], 16
        $region84: #{new_mlpe_forward.1} parent=71 // pred_fallthru
          _
        // Predicated region
        $region85: #{new_mlpe_forward.1} parent=71 // pred_check
          %p498 = pneg %p156
        $region86: #{new_mlpe_forward.1} parent=71 // pred_check_branch
          %500 = sbr.rel (%p498) target = $region88
        $region87: #{new_mlpe_forward.1} parent=71 // pred_region
          %501 = dma.done [#allocation8], 1024
        $region88: #{new_mlpe_forward.1} parent=71 // pred_fallthru
          _
        // Predicated region
        $region89: #{new_mlpe_forward.1} parent=71 // pred_check
          %p502 = pneg %p177
        $region90: #{new_mlpe_forward.1} parent=71 // pred_check_branch
          %504 = sbr.rel (%p502) target = $region92
        $region91: #{new_mlpe_forward.1} parent=71 // pred_region
          %505 = dma.done [#allocation8], 16
        $region92: #{new_mlpe_forward.1} parent=71 // pred_fallthru
          _
        // Predicated region
        $region93: #{new_mlpe_forward.1} parent=71 // pred_check
          %p506 = pneg %p198
        $region94: #{new_mlpe_forward.1} parent=71 // pred_check_branch
          %508 = sbr.rel (%p506) target = $region96
        $region95: #{new_mlpe_forward.1} parent=71 // pred_region
          %509 = dma.done [#allocation11], 1024
        $region96: #{new_mlpe_forward.1} parent=71 // pred_fallthru
          _
        // Predicated region
        $region97: #{new_mlpe_forward.1} parent=71 // pred_check
          %p510 = pneg %p219
        $region98: #{new_mlpe_forward.1} parent=71 // pred_check_branch
          %512 = sbr.rel (%p510) target = $region100
        $region99: #{new_mlpe_forward.1} parent=71 // pred_region
          %513 = dma.done [#allocation11], 16
        $region100: #{new_mlpe_forward.1} parent=71 // pred_fallthru
          _
        // Predicated region
        $region101: #{new_mlpe_forward.1} parent=71 // pred_check
          %p514 = pneg %p240
        $region102: #{new_mlpe_forward.1} parent=71 // pred_check_branch
          %516 = sbr.rel (%p514) target = $region104
        $region103: #{new_mlpe_forward.1} parent=71 // pred_region
          %517 = dma.done [#allocation14], 1024
        $region104: #{new_mlpe_forward.1} parent=71 // pred_fallthru
          _
        // Predicated region
        $region105: #{new_mlpe_forward.1} parent=71 // pred_check
          %p518 = pneg %p261
        $region106: #{new_mlpe_forward.1} parent=71 // pred_check_branch
          %520 = sbr.rel (%p518) target = $region108
        $region107: #{new_mlpe_forward.1} parent=71 // pred_region
          %521 = dma.done [#allocation14], 16
        $region108: #{new_mlpe_forward.1} parent=71 // pred_fallthru
          _
        // Predicated region
        $region109: #{new_mlpe_forward.1} parent=71 // pred_check
          %p522 = pneg %p303
        $region110: #{new_mlpe_forward.1} parent=71 // pred_check_branch
          %524 = sbr.rel (%p522) target = $region112
        $region111: #{new_mlpe_forward.1} parent=71 // pred_region
          %525 = dma.done [#allocation17], 16
        $region112: #{new_mlpe_forward.1} parent=71 // pred_fallthru
          _
        %p526 = scmp.lt.s32.totalorder %s30, 1
        %s527 = scalar_select %p526, %s30, 1
        %s528 = smul.addr %s527, 4
        %s529 = scalar_lea.vmem %s0, %s528
        %p530 = pneg %p51
        %p531 = pneg %p48
        %p532 = pneg %p72
        %p533 = pneg %p69
        %p534 = pneg %p93
        %p535 = pneg %p90
        %p536 = pneg %p114
        %p537 = pneg %p111
        %p538 = pneg %p135
        %p539 = pneg %p132
        %p540 = pneg %p156
        %p541 = pneg %p153
        %p542 = pneg %p177
        %p543 = pneg %p174
        %p544 = pneg %p198
        %p545 = pneg %p195
        %p546 = pneg %p219
        %p547 = pneg %p216
        %p548 = pneg %p240
        %p549 = pneg %p237
        %p550 = pneg %p261
        %p551 = pneg %p258
        %p552 = pneg %p282
        %p553 = pneg %p279
        %p554 = pneg %p303
        %p555 = pneg %p300
        %p556 = pneg %p329
        %p557 = pneg %p326
        %p558 = scmp.lt.s32.totalorder %s30, 1
        %s559 = scalar_select %p558, %s30, 1
        %s560 = smul.addr %s559, 8
        %s561 = scalar_lea.vmem %s13, %s560
        %p562 = scmp.lt.s32.totalorder %s30, 1
        %s563 = scalar_select %p562, %s30, 1
        %s564 = smul.addr %s563, 4
        %s565 = scalar_lea.vmem %s0, %s564
        %p566 = scmp.lt.s32.totalorder %s30, 1
        %s567 = scalar_select %p566, %s30, 1
        %s568 = smul.addr %s567, 8
        %s569 = scalar_lea.vmem %s13, %s568
        %v571 = vld [vmem:[%s565] sm:$0xf]
        %v572 = vld [vmem:[#allocation2] sm:$0xf]
        %v573 = vld [vmem:[%s2] sm:$0x1]
        %v575 = vlaneseq
        %v576 = vshrl.u32 %v575, 7
        %v577 = vsub.s32 0, %v576
        %v578 = vrot.slane %v573, %v577
        %vm580 = vcmask 64512
        %v582 = vsel %vm580, %v571, 0
        %vm584 = vcmask 1043456
        %v586 = vsel %vm584, %v572, 0
        %588 = vmatprep.subr.bf16.mxu0 0
        %589 = vmatpush1.bf16.msra.mxu0 0
        %590 = vmatprep.subr.bf16.mxu0 0
        %591 = vmatpush1.bf16.msra.mxu0 0
        %592 = vmatprep.subr.bf16.mxu0 0
        %593 = vmatpush1.bf16.msra.mxu0 0
        %594 = vmatprep.subr.bf16.mxu0 0
        %595 = vmatpush1.bf16.msra.mxu0 0
        %596 = vmatprep.subr.bf16.mxu0 0
        %597 = vmatpush1.bf16.msra.mxu0 0
        %598 = vmatprep.subr.bf16.mxu0 0
        %599 = vmatpush1.bf16.msra.mxu0 0
        %600 = vmatprep.subr.bf16.mxu0 0
        %601 = vmatpush1.bf16.msra.mxu0 0
        %602 = vmatprep.subr.bf16.mxu0 0
        %603 = vmatpush1.bf16.msra.mxu0 %v586
        %604 = vmatprep.subr.bf16.mxu0 0
        %605 = vmatpush2.bf16.msra.mxu0 0
        %606 = vmatprep.subr.bf16.mxu0 0
        %607 = vmatpush2.bf16.msra.mxu0 0
        %608 = vmatprep.subr.bf16.mxu0 0
        %609 = vmatpush2.bf16.msra.mxu0 0
        %610 = vmatprep.subr.bf16.mxu0 0
        %611 = vmatpush2.bf16.msra.mxu0 0
        %612 = vmatprep.subr.bf16.mxu0 0
        %613 = vmatpush2.bf16.msra.mxu0 0
        %614 = vmatprep.subr.bf16.mxu0 0
        %615 = vmatpush2.bf16.msra.mxu0 0
        %616 = vmatprep.subr.bf16.mxu0 0
        %617 = vmatpush2.bf16.msra.mxu0 0
        %618 = vmatprep.subr.bf16.mxu0 0
        %619 = vmatpush2.bf16.msra.mxu0 0
        %620 = vmatprep.mubr.bf16.mxu0 0
        %621 = vmatmul.mubr.bf16.gmra.mxu0 %v582
        %v622 = vpop.f32.mrf.mxu0
        %v623 = vadd.f32 %v578, %v622
        %v624 = vpop.f32.mrf.mxu0
        %v625 = vpop.f32.mrf.mxu0
        %v626 = vpop.f32.mrf.mxu0
        %627 = vdwg.mxu0
        %v628 = vpack.c.bf16 %v623, %v623
        %v629 = vld [vmem:[#allocation4] sm:$0xf]
        %v630 = vld [vmem:[#allocation4 + $0x4] sm:$0xf]
        %v631 = vld [vmem:[#allocation4 + $0x8] sm:$0xf]
        %v632 = vld [vmem:[#allocation4 + $0xc] sm:$0xf]
        %v633 = vld [vmem:[#allocation4 + $0x10] sm:$0xf]
        %v634 = vld [vmem:[#allocation4 + $0x14] sm:$0xf]
        %v635 = vld [vmem:[#allocation4 + $0x18] sm:$0xf]
        %v636 = vld [vmem:[#allocation4 + $0x1c] sm:$0xf]
        %v637 = vld [vmem:[#allocation4 + $0x20] sm:$0xf]
        %v638 = vld [vmem:[#allocation4 + $0x24] sm:$0xf]
        %v639 = vld [vmem:[#allocation4 + $0x28] sm:$0xf]
        %v640 = vld [vmem:[#allocation4 + $0x2c] sm:$0xf]
        %v641 = vld [vmem:[#allocation4 + $0x30] sm:$0xf]
        %v642 = vld [vmem:[#allocation4 + $0x34] sm:$0xf]
        %v643 = vld [vmem:[#allocation4 + $0x38] sm:$0xf]
        %v644 = vld [vmem:[#allocation4 + $0x3c] sm:$0xf]
        %v645 = vld [vmem:[#allocation6] sm:$0x1]
        %v647 = vlaneseq
        %v648 = vshrl.u32 %v647, 7
        %v649 = vsub.s32 0, %v648
        %v650 = vrot.slane %v645, %v649
        %v668 = vunpack.c.l.b16 %v629
        %v669 = vunpack.c.l.b16 %v630
        %v670 = vunpack.c.l.b16 %v631
        %v671 = vunpack.c.l.b16 %v632
        %v672 = vunpack.c.l.b16 %v633
        %v673 = vunpack.c.l.b16 %v634
        %v674 = vunpack.c.l.b16 %v635
        %v675 = vunpack.c.l.b16 %v636
        %v676 = vunpack.c.l.b16 %v637
        %v677 = vunpack.c.l.b16 %v638
        %v678 = vunpack.c.l.b16 %v639
        %v679 = vunpack.c.l.b16 %v640
        %v680 = vunpack.c.l.b16 %v641
        %v681 = vunpack.c.l.b16 %v642
        %v682 = vunpack.c.l.b16 %v643
        %v683 = vunpack.c.l.b16 %v644
        %v684 = vpack.c.b16 %v669, %v668
        %v685 = vpack.c.b16 %v671, %v670
        %v686 = vpack.c.b16 %v673, %v672
        %v687 = vpack.c.b16 %v675, %v674
        %v688 = vpack.c.b16 %v677, %v676
        %v689 = vpack.c.b16 %v679, %v678
        %v690 = vpack.c.b16 %v681, %v680
        %v691 = vpack.c.b16 %v683, %v682
        %700 = vmatprep.subr.bf16.mxu0 0
        %701 = vmatpush1.bf16.msra.mxu0 %v691
        %702 = vmatprep.subr.bf16.mxu0 0
        %703 = vmatpush1.bf16.msra.mxu0 %v690
        %704 = vmatprep.subr.bf16.mxu0 0
        %705 = vmatpush1.bf16.msra.mxu0 %v689
        %706 = vmatprep.subr.bf16.mxu0 0
        %707 = vmatpush1.bf16.msra.mxu0 %v688
        %708 = vmatprep.subr.bf16.mxu0 0
        %709 = vmatpush1.bf16.msra.mxu0 %v687
        %710 = vmatprep.subr.bf16.mxu0 0
        %711 = vmatpush1.bf16.msra.mxu0 %v686
        %712 = vmatprep.subr.bf16.mxu0 0
        %713 = vmatpush1.bf16.msra.mxu0 %v685
        %714 = vmatprep.subr.bf16.mxu0 0
        %715 = vmatpush1.bf16.msra.mxu0 %v684
        %716 = vmatprep.subr.bf16.mxu0 0
        %717 = vmatpush2.bf16.msra.mxu0 0
        %718 = vmatprep.subr.bf16.mxu0 0
        %719 = vmatpush2.bf16.msra.mxu0 0
        %720 = vmatprep.subr.bf16.mxu0 0
        %721 = vmatpush2.bf16.msra.mxu0 0
        %722 = vmatprep.subr.bf16.mxu0 0
        %723 = vmatpush2.bf16.msra.mxu0 0
        %724 = vmatprep.subr.bf16.mxu0 0
        %725 = vmatpush2.bf16.msra.mxu0 0
        %726 = vmatprep.subr.bf16.mxu0 0
        %727 = vmatpush2.bf16.msra.mxu0 0
        %728 = vmatprep.subr.bf16.mxu0 0
        %729 = vmatpush2.bf16.msra.mxu0 0
        %730 = vmatprep.subr.bf16.mxu0 0
        %731 = vmatpush2.bf16.msra.mxu0 0
        %732 = vmatprep.mubr.bf16.mxu0 0
        %733 = vmatmul.mubr.bf16.gmra.mxu0 %v628
        %v734 = vpop.f32.mrf.mxu0
        %v735 = vadd.f32 %v650, %v734
        %v736 = vpop.f32.mrf.mxu0
        %v737 = vpop.f32.mrf.mxu0
        %v738 = vpop.f32.mrf.mxu0
        %739 = vdwg.mxu0
        %v740 = vmax.f32 %v735, 0.0
        %v741 = vpack.c.bf16 %v740, %v740
        %v742 = vld [vmem:[#allocation7] sm:$0xf]
        %v743 = vld [vmem:[#allocation7 + $0x4] sm:$0xf]
        %v744 = vld [vmem:[#allocation7 + $0x8] sm:$0xf]
        %v745 = vld [vmem:[#allocation7 + $0xc] sm:$0xf]
        %v746 = vld [vmem:[#allocation7 + $0x10] sm:$0xf]
        %v747 = vld [vmem:[#allocation7 + $0x14] sm:$0xf]
        %v748 = vld [vmem:[#allocation7 + $0x18] sm:$0xf]
        %v749 = vld [vmem:[#allocation7 + $0x1c] sm:$0xf]
        %v750 = vld [vmem:[#allocation7 + $0x20] sm:$0xf]
        %v751 = vld [vmem:[#allocation7 + $0x24] sm:$0xf]
        %v752 = vld [vmem:[#allocation7 + $0x28] sm:$0xf]
        %v753 = vld [vmem:[#allocation7 + $0x2c] sm:$0xf]
        %v754 = vld [vmem:[#allocation7 + $0x30] sm:$0xf]
        %v755 = vld [vmem:[#allocation7 + $0x34] sm:$0xf]
        %v756 = vld [vmem:[#allocation7 + $0x38] sm:$0xf]
        %v757 = vld [vmem:[#allocation7 + $0x3c] sm:$0xf]
        %v758 = vld [vmem:[#allocation9] sm:$0x1]
        %v760 = vlaneseq
        %v761 = vshrl.u32 %v760, 7
        %v762 = vsub.s32 0, %v761
        %v763 = vrot.slane %v758, %v762
        %v781 = vunpack.c.l.b16 %v742
        %v782 = vunpack.c.l.b16 %v743
        %v783 = vunpack.c.l.b16 %v744
        %v784 = vunpack.c.l.b16 %v745
        %v785 = vunpack.c.l.b16 %v746
        %v786 = vunpack.c.l.b16 %v747
        %v787 = vunpack.c.l.b16 %v748
        %v788 = vunpack.c.l.b16 %v749
        %v789 = vunpack.c.l.b16 %v750
        %v790 = vunpack.c.l.b16 %v751
        %v791 = vunpack.c.l.b16 %v752
        %v792 = vunpack.c.l.b16 %v753
        %v793 = vunpack.c.l.b16 %v754
        %v794 = vunpack.c.l.b16 %v755
        %v795 = vunpack.c.l.b16 %v756
        %v796 = vunpack.c.l.b16 %v757
        %v797 = vpack.c.b16 %v782, %v781
        %v798 = vpack.c.b16 %v784, %v783
        %v799 = vpack.c.b16 %v786, %v785
        %v800 = vpack.c.b16 %v788, %v787
        %v801 = vpack.c.b16 %v790, %v789
        %v802 = vpack.c.b16 %v792, %v791
        %v803 = vpack.c.b16 %v794, %v793
        %v804 = vpack.c.b16 %v796, %v795
        %813 = vmatprep.subr.bf16.mxu0 0
        %814 = vmatpush1.bf16.msra.mxu0 %v804
        %815 = vmatprep.subr.bf16.mxu0 0
        %816 = vmatpush1.bf16.msra.mxu0 %v803
        %817 = vmatprep.subr.bf16.mxu0 0
        %818 = vmatpush1.bf16.msra.mxu0 %v802
        %819 = vmatprep.subr.bf16.mxu0 0
        %820 = vmatpush1.bf16.msra.mxu0 %v801
        %821 = vmatprep.subr.bf16.mxu0 0
        %822 = vmatpush1.bf16.msra.mxu0 %v800
        %823 = vmatprep.subr.bf16.mxu0 0
        %824 = vmatpush1.bf16.msra.mxu0 %v799
        %825 = vmatprep.subr.bf16.mxu0 0
        %826 = vmatpush1.bf16.msra.mxu0 %v798
        %827 = vmatprep.subr.bf16.mxu0 0
        %828 = vmatpush1.bf16.msra.mxu0 %v797
        %829 = vmatprep.subr.bf16.mxu0 0
        %830 = vmatpush2.bf16.msra.mxu0 0
        %831 = vmatprep.subr.bf16.mxu0 0
        %832 = vmatpush2.bf16.msra.mxu0 0
        %833 = vmatprep.subr.bf16.mxu0 0
        %834 = vmatpush2.bf16.msra.mxu0 0
        %835 = vmatprep.subr.bf16.mxu0 0
        %836 = vmatpush2.bf16.msra.mxu0 0
        %837 = vmatprep.subr.bf16.mxu0 0
        %838 = vmatpush2.bf16.msra.mxu0 0
        %839 = vmatprep.subr.bf16.mxu0 0
        %840 = vmatpush2.bf16.msra.mxu0 0
        %841 = vmatprep.subr.bf16.mxu0 0
        %842 = vmatpush2.bf16.msra.mxu0 0
        %843 = vmatprep.subr.bf16.mxu0 0
        %844 = vmatpush2.bf16.msra.mxu0 0
        %845 = vmatprep.mubr.bf16.mxu0 0
        %846 = vmatmul.mubr.bf16.gmra.mxu0 %v741
        %v847 = vpop.f32.mrf.mxu0
        %v848 = vadd.f32 %v763, %v847
        %v849 = vpop.f32.mrf.mxu0
        %v850 = vpop.f32.mrf.mxu0
        %v851 = vpop.f32.mrf.mxu0
        %852 = vdwg.mxu0
        %v853 = vmax.f32 %v848, 0.0
        %v854 = vpack.c.bf16 %v853, %v853
        %v855 = vld [vmem:[#allocation10] sm:$0xf]
        %v856 = vld [vmem:[#allocation10 + $0x4] sm:$0xf]
        %v857 = vld [vmem:[#allocation10 + $0x8] sm:$0xf]
        %v858 = vld [vmem:[#allocation10 + $0xc] sm:$0xf]
        %v859 = vld [vmem:[#allocation10 + $0x10] sm:$0xf]
        %v860 = vld [vmem:[#allocation10 + $0x14] sm:$0xf]
        %v861 = vld [vmem:[#allocation10 + $0x18] sm:$0xf]
        %v862 = vld [vmem:[#allocation10 + $0x1c] sm:$0xf]
        %v863 = vld [vmem:[#allocation10 + $0x20] sm:$0xf]
        %v864 = vld [vmem:[#allocation10 + $0x24] sm:$0xf]
        %v865 = vld [vmem:[#allocation10 + $0x28] sm:$0xf]
        %v866 = vld [vmem:[#allocation10 + $0x2c] sm:$0xf]
        %v867 = vld [vmem:[#allocation10 + $0x30] sm:$0xf]
        %v868 = vld [vmem:[#allocation10 + $0x34] sm:$0xf]
        %v869 = vld [vmem:[#allocation10 + $0x38] sm:$0xf]
        %v870 = vld [vmem:[#allocation10 + $0x3c] sm:$0xf]
        %v871 = vld [vmem:[#allocation12] sm:$0x1]
        %v873 = vlaneseq
        %v874 = vshrl.u32 %v873, 7
        %v875 = vsub.s32 0, %v874
        %v876 = vrot.slane %v871, %v875
        %v894 = vunpack.c.l.b16 %v855
        %v895 = vunpack.c.l.b16 %v856
        %v896 = vunpack.c.l.b16 %v857
        %v897 = vunpack.c.l.b16 %v858
        %v898 = vunpack.c.l.b16 %v859
        %v899 = vunpack.c.l.b16 %v860
        %v900 = vunpack.c.l.b16 %v861
        %v901 = vunpack.c.l.b16 %v862
        %v902 = vunpack.c.l.b16 %v863
        %v903 = vunpack.c.l.b16 %v864
        %v904 = vunpack.c.l.b16 %v865
        %v905 = vunpack.c.l.b16 %v866
        %v906 = vunpack.c.l.b16 %v867
        %v907 = vunpack.c.l.b16 %v868
        %v908 = vunpack.c.l.b16 %v869
        %v909 = vunpack.c.l.b16 %v870
        %v910 = vpack.c.b16 %v895, %v894
        %v911 = vpack.c.b16 %v897, %v896
        %v912 = vpack.c.b16 %v899, %v898
        %v913 = vpack.c.b16 %v901, %v900
        %v914 = vpack.c.b16 %v903, %v902
        %v915 = vpack.c.b16 %v905, %v904
        %v916 = vpack.c.b16 %v907, %v906
        %v917 = vpack.c.b16 %v909, %v908
        %926 = vmatprep.subr.bf16.mxu0 0
        %927 = vmatpush1.bf16.msra.mxu0 %v917
        %928 = vmatprep.subr.bf16.mxu0 0
        %929 = vmatpush1.bf16.msra.mxu0 %v916
        %930 = vmatprep.subr.bf16.mxu0 0
        %931 = vmatpush1.bf16.msra.mxu0 %v915
        %932 = vmatprep.subr.bf16.mxu0 0
        %933 = vmatpush1.bf16.msra.mxu0 %v914
        %934 = vmatprep.subr.bf16.mxu0 0
        %935 = vmatpush1.bf16.msra.mxu0 %v913
        %936 = vmatprep.subr.bf16.mxu0 0
        %937 = vmatpush1.bf16.msra.mxu0 %v912
        %938 = vmatprep.subr.bf16.mxu0 0
        %939 = vmatpush1.bf16.msra.mxu0 %v911
        %940 = vmatprep.subr.bf16.mxu0 0
        %941 = vmatpush1.bf16.msra.mxu0 %v910
        %942 = vmatprep.subr.bf16.mxu0 0
        %943 = vmatpush2.bf16.msra.mxu0 0
        %944 = vmatprep.subr.bf16.mxu0 0
        %945 = vmatpush2.bf16.msra.mxu0 0
        %946 = vmatprep.subr.bf16.mxu0 0
        %947 = vmatpush2.bf16.msra.mxu0 0
        %948 = vmatprep.subr.bf16.mxu0 0
        %949 = vmatpush2.bf16.msra.mxu0 0
        %950 = vmatprep.subr.bf16.mxu0 0
        %951 = vmatpush2.bf16.msra.mxu0 0
        %952 = vmatprep.subr.bf16.mxu0 0
        %953 = vmatpush2.bf16.msra.mxu0 0
        %954 = vmatprep.subr.bf16.mxu0 0
        %955 = vmatpush2.bf16.msra.mxu0 0
        %956 = vmatprep.subr.bf16.mxu0 0
        %957 = vmatpush2.bf16.msra.mxu0 0
        %958 = vmatprep.mubr.bf16.mxu0 0
        %959 = vmatmul.mubr.bf16.gmra.mxu0 %v854
        %v960 = vpop.f32.mrf.mxu0
        %v961 = vadd.f32 %v876, %v960
        %v962 = vpop.f32.mrf.mxu0
        %v963 = vpop.f32.mrf.mxu0
        %v964 = vpop.f32.mrf.mxu0
        %965 = vdwg.mxu0
        %v966 = vmax.f32 %v961, 0.0
        %v967 = vpack.c.bf16 %v966, %v966
        %v968 = vld [vmem:[#allocation13] sm:$0xf]
        %v969 = vld [vmem:[#allocation13 + $0x4] sm:$0xf]
        %v970 = vld [vmem:[#allocation13 + $0x8] sm:$0xf]
        %v971 = vld [vmem:[#allocation13 + $0xc] sm:$0xf]
        %v972 = vld [vmem:[#allocation13 + $0x10] sm:$0xf]
        %v973 = vld [vmem:[#allocation13 + $0x14] sm:$0xf]
        %v974 = vld [vmem:[#allocation13 + $0x18] sm:$0xf]
        %v975 = vld [vmem:[#allocation13 + $0x1c] sm:$0xf]
        %v976 = vld [vmem:[#allocation13 + $0x20] sm:$0xf]
        %v977 = vld [vmem:[#allocation13 + $0x24] sm:$0xf]
        %v978 = vld [vmem:[#allocation13 + $0x28] sm:$0xf]
        %v979 = vld [vmem:[#allocation13 + $0x2c] sm:$0xf]
        %v980 = vld [vmem:[#allocation13 + $0x30] sm:$0xf]
        %v981 = vld [vmem:[#allocation13 + $0x34] sm:$0xf]
        %v982 = vld [vmem:[#allocation13 + $0x38] sm:$0xf]
        %v983 = vld [vmem:[#allocation13 + $0x3c] sm:$0xf]
        %v984 = vld [vmem:[#allocation15] sm:$0x1]
        %v986 = vlaneseq
        %v987 = vshrl.u32 %v986, 7
        %v988 = vsub.s32 0, %v987
        %v989 = vrot.slane %v984, %v988
        %v1007 = vunpack.c.l.b16 %v968
        %v1008 = vunpack.c.l.b16 %v969
        %v1009 = vunpack.c.l.b16 %v970
        %v1010 = vunpack.c.l.b16 %v971
        %v1011 = vunpack.c.l.b16 %v972
        %v1012 = vunpack.c.l.b16 %v973
        %v1013 = vunpack.c.l.b16 %v974
        %v1014 = vunpack.c.l.b16 %v975
        %v1015 = vunpack.c.l.b16 %v976
        %v1016 = vunpack.c.l.b16 %v977
        %v1017 = vunpack.c.l.b16 %v978
        %v1018 = vunpack.c.l.b16 %v979
        %v1019 = vunpack.c.l.b16 %v980
        %v1020 = vunpack.c.l.b16 %v981
        %v1021 = vunpack.c.l.b16 %v982
        %v1022 = vunpack.c.l.b16 %v983
        %v1023 = vpack.c.b16 %v1008, %v1007
        %v1024 = vpack.c.b16 %v1010, %v1009
        %v1025 = vpack.c.b16 %v1012, %v1011
        %v1026 = vpack.c.b16 %v1014, %v1013
        %v1027 = vpack.c.b16 %v1016, %v1015
        %v1028 = vpack.c.b16 %v1018, %v1017
        %v1029 = vpack.c.b16 %v1020, %v1019
        %v1030 = vpack.c.b16 %v1022, %v1021
        %1039 = vmatprep.subr.bf16.mxu0 0
        %1040 = vmatpush1.bf16.msra.mxu0 %v1030
        %1041 = vmatprep.subr.bf16.mxu0 0
        %1042 = vmatpush1.bf16.msra.mxu0 %v1029
        %1043 = vmatprep.subr.bf16.mxu0 0
        %1044 = vmatpush1.bf16.msra.mxu0 %v1028
        %1045 = vmatprep.subr.bf16.mxu0 0
        %1046 = vmatpush1.bf16.msra.mxu0 %v1027
        %1047 = vmatprep.subr.bf16.mxu0 0
        %1048 = vmatpush1.bf16.msra.mxu0 %v1026
        %1049 = vmatprep.subr.bf16.mxu0 0
        %1050 = vmatpush1.bf16.msra.mxu0 %v1025
        %1051 = vmatprep.subr.bf16.mxu0 0
        %1052 = vmatpush1.bf16.msra.mxu0 %v1024
        %1053 = vmatprep.subr.bf16.mxu0 0
        %1054 = vmatpush1.bf16.msra.mxu0 %v1023
        %1055 = vmatprep.subr.bf16.mxu0 0
        %1056 = vmatpush2.bf16.msra.mxu0 0
        %1057 = vmatprep.subr.bf16.mxu0 0
        %1058 = vmatpush2.bf16.msra.mxu0 0
        %1059 = vmatprep.subr.bf16.mxu0 0
        %1060 = vmatpush2.bf16.msra.mxu0 0
        %1061 = vmatprep.subr.bf16.mxu0 0
        %1062 = vmatpush2.bf16.msra.mxu0 0
        %1063 = vmatprep.subr.bf16.mxu0 0
        %1064 = vmatpush2.bf16.msra.mxu0 0
        %1065 = vmatprep.subr.bf16.mxu0 0
        %1066 = vmatpush2.bf16.msra.mxu0 0
        %1067 = vmatprep.subr.bf16.mxu0 0
        %1068 = vmatpush2.bf16.msra.mxu0 0
        %1069 = vmatprep.subr.bf16.mxu0 0
        %1070 = vmatpush2.bf16.msra.mxu0 0
        %1071 = vmatprep.mubr.bf16.mxu0 0
        %1072 = vmatmul.mubr.bf16.gmra.mxu0 %v967
        %v1073 = vpop.f32.mrf.mxu0
        %v1074 = vadd.f32 %v989, %v1073
        %v1075 = vpop.f32.mrf.mxu0
        %v1076 = vpop.f32.mrf.mxu0
        %v1077 = vpop.f32.mrf.mxu0
        %1078 = vdwg.mxu0
        %v1079 = vmax.f32 %v1074, 0.0
        %v1080 = vpack.c.bf16 %v1079, %v1079
        %v1081 = vld [vmem:[%s11] sm:$0xf]
        %v1082 = vld [vmem:[%s11 + $0x4] sm:$0xf]
        %v1083 = vld [vmem:[%s11 + $0x8] sm:$0xf]
        %v1084 = vld [vmem:[%s11 + $0xc] sm:$0xf]
        %v1085 = vld [vmem:[%s11 + $0x10] sm:$0xf]
        %v1086 = vld [vmem:[%s11 + $0x14] sm:$0xf]
        %v1087 = vld [vmem:[%s11 + $0x18] sm:$0xf]
        %v1088 = vld [vmem:[%s11 + $0x1c] sm:$0xf]
        %v1089 = vld [vmem:[%s11 + $0x20] sm:$0xf]
        %v1090 = vld [vmem:[%s11 + $0x24] sm:$0xf]
        %v1091 = vld [vmem:[%s11 + $0x28] sm:$0xf]
        %v1092 = vld [vmem:[%s11 + $0x2c] sm:$0xf]
        %v1093 = vld [vmem:[%s11 + $0x30] sm:$0xf]
        %v1094 = vld [vmem:[%s11 + $0x34] sm:$0xf]
        %v1095 = vld [vmem:[%s11 + $0x38] sm:$0xf]
        %v1096 = vld [vmem:[%s11 + $0x3c] sm:$0xf]
        %v1097 = vld [vmem:[#allocation16] sm:$0x1]
        %v1099 = vlaneseq
        %v1100 = vshrl.u32 %v1099, 7
        %v1101 = vsub.s32 0, %v1100
        %v1102 = vrot.slane %v1097, %v1101
        %v1120 = vunpack.c.l.b16 %v1081
        %v1121 = vunpack.c.l.b16 %v1082
        %v1122 = vunpack.c.l.b16 %v1083
        %v1123 = vunpack.c.l.b16 %v1084
        %v1124 = vunpack.c.l.b16 %v1085
        %v1125 = vunpack.c.l.b16 %v1086
        %v1126 = vunpack.c.l.b16 %v1087
        %v1127 = vunpack.c.l.b16 %v1088
        %v1128 = vunpack.c.l.b16 %v1089
        %v1129 = vunpack.c.l.b16 %v1090
        %v1130 = vunpack.c.l.b16 %v1091
        %v1131 = vunpack.c.l.b16 %v1092
        %v1132 = vunpack.c.l.b16 %v1093
        %v1133 = vunpack.c.l.b16 %v1094
        %v1134 = vunpack.c.l.b16 %v1095
        %v1135 = vunpack.c.l.b16 %v1096
        %v1136 = vpack.c.b16 %v1121, %v1120
        %v1137 = vpack.c.b16 %v1123, %v1122
        %v1138 = vpack.c.b16 %v1125, %v1124
        %v1139 = vpack.c.b16 %v1127, %v1126
        %v1140 = vpack.c.b16 %v1129, %v1128
        %v1141 = vpack.c.b16 %v1131, %v1130
        %v1142 = vpack.c.b16 %v1133, %v1132
        %v1143 = vpack.c.b16 %v1135, %v1134
        %1152 = vmatprep.subr.bf16.mxu0 0
        %1153 = vmatpush1.bf16.msra.mxu0 %v1143
        %1154 = vmatprep.subr.bf16.mxu0 0
        %1155 = vmatpush1.bf16.msra.mxu0 %v1142
        %1156 = vmatprep.subr.bf16.mxu0 0
        %1157 = vmatpush1.bf16.msra.mxu0 %v1141
        %1158 = vmatprep.subr.bf16.mxu0 0
        %1159 = vmatpush1.bf16.msra.mxu0 %v1140
        %1160 = vmatprep.subr.bf16.mxu0 0
        %1161 = vmatpush1.bf16.msra.mxu0 %v1139
        %1162 = vmatprep.subr.bf16.mxu0 0
        %1163 = vmatpush1.bf16.msra.mxu0 %v1138
        %1164 = vmatprep.subr.bf16.mxu0 0
        %1165 = vmatpush1.bf16.msra.mxu0 %v1137
        %1166 = vmatprep.subr.bf16.mxu0 0
        %1167 = vmatpush1.bf16.msra.mxu0 %v1136
        %1168 = vmatprep.subr.bf16.mxu0 0
        %1169 = vmatpush2.bf16.msra.mxu0 0
        %1170 = vmatprep.subr.bf16.mxu0 0
        %1171 = vmatpush2.bf16.msra.mxu0 0
        %1172 = vmatprep.subr.bf16.mxu0 0
        %1173 = vmatpush2.bf16.msra.mxu0 0
        %1174 = vmatprep.subr.bf16.mxu0 0
        %1175 = vmatpush2.bf16.msra.mxu0 0
        %1176 = vmatprep.subr.bf16.mxu0 0
        %1177 = vmatpush2.bf16.msra.mxu0 0
        %1178 = vmatprep.subr.bf16.mxu0 0
        %1179 = vmatpush2.bf16.msra.mxu0 0
        %1180 = vmatprep.subr.bf16.mxu0 0
        %1181 = vmatpush2.bf16.msra.mxu0 0
        %1182 = vmatprep.subr.bf16.mxu0 0
        %1183 = vmatpush2.bf16.msra.mxu0 0
        %1184 = vmatprep.mubr.bf16.mxu0 0
        %1185 = vmatmul.mubr.bf16.gmra.mxu0 %v1080
        %v1186 = vpop.f32.mrf.mxu0
        %v1187 = vadd.f32 %v1102, %v1186
        %v1188 = vpop.f32.mrf.mxu0
        %v1189 = vpop.f32.mrf.mxu0
        %v1190 = vpop.f32.mrf.mxu0
        %1191 = vdwg.mxu0
        %vm1192 = vcmask 15360
        %1193 = vst.msk [vmem:[%s569] sm:$0xff] %vm1192, %v1187
        %p1194 = scmp.lt.s32.totalorder %s30, 1
        %s1195 = scalar_select %p1194, %s30, 1
        %s1196 = smul.addr %s1195, 8
        %s1197 = scalar_lea.vmem %s13, %s1196
        // Predicated region
        $region113: #{new_mlpe_forward.1} parent=71 // pred_check
          %p1198 = pneg %p326
        $region114: #{new_mlpe_forward.1} parent=71 // pred_check_branch
          %1200 = sbr.rel (%p1198) target = $region116
        $region115: #{new_mlpe_forward.1} parent=71 // pred_region
          _
        $region116: #{new_mlpe_forward.1} parent=71 // pred_fallthru
          _
      $region72: #{new_mlpe_forward.1} parent=5 // pred_fallthru
        _
      %p1201 = scmp.le.s32.totalorder 2, %s25
      // Predicated region
      $region117: #{new_mlpe_forward.1} parent=5 // pred_check
        %p1202 = pneg %p1201
      $region118: #{new_mlpe_forward.1} parent=5 // pred_check_branch
        %1204 = sbr.rel (%p1202) target = $region120
      $region119: #{new_mlpe_forward.1} parent=5 // pred_region
        %s1205 = ssub.s32 %s25, 2
        // Predicated region
        $region121: #{new_mlpe_forward.1} parent=119 // pred_check
          %p1206 = pneg %p332
        $region122: #{new_mlpe_forward.1} parent=119 // pred_check_branch
          %1208 = sbr.rel (%p1206) target = $region124
        $region123: #{new_mlpe_forward.1} parent=119 // pred_region
          %p1209 = scmp.lt.s32.totalorder %s31, 1
          %s1210 = scalar_select %p1209, %s31, 1
          %s1211 = smul.addr %s1210, 8
          %s1212 = scalar_lea.vmem %s13, %s1211
        $region124: #{new_mlpe_forward.1} parent=119 // pred_fallthru
          _
      $region120: #{new_mlpe_forward.1} parent=5 // pred_fallthru
        _
    $region6: #{new_mlpe_forward.1} parent=1 // loop_footer
      %s29 = sadd.s32 1, %s25
    $region7: #{new_mlpe_forward.1} parent=1 // loop_footer_branch
      %24 = sbr.rel target = $region3
    $region8: #{new_mlpe_forward.1} parent=1 // loop_exit
      _
    %1213 = vsyncpa [#allocation3], 1
    %s1214 = scalar_lea.sflag [#allocation3], 1
    %1215 = vsyncpa %s1214, 1
    %1216 = vsyncpa [#allocation5], 1
    %1217 = vsyncpa [#allocation8], 1
    %1218 = vsyncpa [#allocation11], 1
    %1219 = vsyncpa [#allocation14], 1
    %1220 = vsyncpa [#allocation17], 1

</llo_original>
